<compile_context>
chip_gen: v7x
topology: tpu7x:2x2x1
jax: 0.10.0
libtpu: 0.0.40
codegen_flags: <defaults>
</compile_context>

<pallas_src>
import functools

import jax
import jax.numpy as jnp
from jax import lax
from jax.experimental import pallas as pl
from jax.experimental.pallas import tpu as pltpu

_LANES = 128
_SUBLANES = 8
_CHUNK = _LANES * _SUBLANES  # 1024 elements


def _focal_terms(x, t, alpha, gamma):
    """Elementwise focal loss in f32 (BCEWithLogits, reduction='none')."""
    x = x.astype(jnp.float32)
    t = t.astype(jnp.float32)
    # Numerically stable BCE-with-logits: max(x,0) - x*t + log1p(exp(-|x|))
    bce = jnp.maximum(x, 0.0) - x * t + jnp.log1p(jnp.exp(-jnp.abs(x)))
    pt = jnp.exp(-bce)
    q = 1.0 - pt
    g = float(gamma)
    if g == int(g) and int(g) >= 0:
        qg = lax.integer_pow(q, int(g))  # VPU multiplies, no EUP pow path
    else:
        qg = q ** jnp.float32(g)
    return jnp.float32(alpha) * qg * bce


def _focal_sum_kernel(x_ref, t_ref, out_ref, *,
                      alpha, gamma, tile_rows, steps, valid_rows, needs_mask):
    c = pl.program_id(0)   # core-split axis ("parallel")
    i = pl.program_id(1)   # reduction axis ("arbitrary")

    # out_ref is this core's resident (8, 128) partial-sum block.
    @pl.when(i == 0)
    def _init():
        out_ref[...] = jnp.zeros_like(out_ref)

    focal = _focal_terms(x_ref[...], t_ref[...], alpha, gamma)

    if needs_mask:
        # Zero rows past the end of the logical row range (partial last block
        # and dummy blocks created by the core split). OOB block data may be
        # garbage; jnp.where is a select, so it never contaminates the sum.
        block_idx = c * steps + i
        row_ids = lax.broadcasted_iota(jnp.int32, (tile_rows, _LANES), 0)
        global_row = block_idx * tile_rows + row_ids
        focal = jnp.where(global_row < valid_rows, focal, 0.0)

    # Per-lane/sublane accumulation: reshape groups whole (8,128) vregs, so
    # the axis-0 sum is pure VPU vreg adds (no per-step XLU reduce).
    out_ref[...] += jnp.sum(focal.reshape(-1, _SUBLANES, _LANES), axis=0)


def _round_up(a, b):
    return (a + b - 1) // b * b


def binary_focal_loss(inputs, targets, *, alpha=0.25, gamma=2,
                      size_average=True, tile_rows=2048, num_cores=2):
    """Matches BinaryFocalLoss.forward: mean (or sum) of the focal loss."""
    assert inputs.shape == targets.shape
    n_elems = inputs.size

    # Keep incoming dtypes - the kernel casts to f32 internally.
    flat_x = inputs.reshape(-1)
    flat_t = targets.reshape(-1)

    # Head: largest multiple of 8*128 elements (copy-free reshape to 2-D).
    n_head = (n_elems // _CHUNK) * _CHUNK
    total = jnp.float32(0.0)

    if n_head:
        rows = n_head // _LANES  # multiple of 8
        head_x = flat_x if n_head == n_elems else flat_x[:n_head]
        head_t = flat_t if n_head == n_elems else flat_t[:n_head]
        x2d = head_x.reshape(rows, _LANES)
        t2d = head_t.reshape(rows, _LANES)

        tr = min(_round_up(int(tile_rows), _SUBLANES), rows)  # multiple of 8
        total_blocks = pl.cdiv(rows, tr)
        nc = max(1, min(int(num_cores), total_blocks))
        steps = pl.cdiv(total_blocks, nc)
        needs_mask = (nc * steps * tr != rows)

        def in_map(c, i):
            # Clamp so dummy/partial block DMAs stay in bounds; the in-kernel
            # row mask (keyed on the logical block index) zeroes their output.
            return (jnp.minimum(c * steps + i, total_blocks - 1), 0)

        kernel = functools.partial(
            _focal_sum_kernel,
            alpha=float(alpha), gamma=gamma, tile_rows=tr, steps=steps,
            valid_rows=rows, needs_mask=needs_mask)

        partials = pl.pallas_call(
            kernel,
            out_shape=jax.ShapeDtypeStruct((nc * _SUBLANES, _LANES),
                                           jnp.float32),
            grid_spec=pltpu.PrefetchScalarGridSpec(
                num_scalar_prefetch=0,
                grid=(nc, steps),
                in_specs=[
                    pl.BlockSpec((tr, _LANES), in_map),
                    pl.BlockSpec((tr, _LANES), in_map),
                ],
                out_specs=pl.BlockSpec((_SUBLANES, _LANES),
                                       lambda c, i: (c, 0)),
            ),
            compiler_params=pltpu.CompilerParams(
                dimension_semantics=("parallel", "arbitrary")),
        )(x2d, t2d)
        total = total + jnp.sum(partials)

    if n_head < n_elems:
        # Ragged tail (< 1024 elements): trivially cheap in plain JAX; avoids
        # materializing a padded copy of the whole input.
        total = total + jnp.sum(
            _focal_terms(flat_x[n_head:], flat_t[n_head:], alpha, gamma))

    if size_average:
        return total / jnp.float32(n_elems)
    return total


def _reference(inputs, targets, alpha=0.25, gamma=2, size_average=True):
    x = inputs.astype(jnp.float32)
    t = targets.astype(jnp.float32)
    bce = jnp.maximum(x, 0.0) - x * t + jnp.log1p(jnp.exp(-jnp.abs(x)))
    pt = jnp.exp(-bce)
    fl = alpha * (1.0 - pt) ** gamma * bce
    return fl.mean() if size_average else fl.sum()


if __name__ == "__main__":
    key = jax.random.PRNGKey(0)
    k1, k2, k3, k4 = jax.random.split(key, 4)

    # Case 1: aligned NCHW shape (single full block, no masking path).
    x1 = jax.random.normal(k1, (2, 4, 16, 16), dtype=jnp.float32) * 2.0
    t1 = (jax.random.uniform(k2, (2, 4, 16, 16)) > 0.5).astype(jnp.float32)
    o1 = jax.block_until_ready(binary_focal_loss(x1, t1))
    r1 = _reference(x1, t1)
    assert jnp.allclose(o1, r1, rtol=1e-5, atol=1e-6), (o1, r1)

    # Case 2: ragged element count (kernel head + plain-JAX tail), bf16 targets.
    x2 = jax.random.normal(k3, (2, 3, 14, 14), dtype=jnp.float32) * 2.0
    t2 = (jax.random.uniform(k4, (2, 3, 14, 14)) > 0.5).astype(jnp.bfloat16)
    o2 = jax.block_until_ready(binary_focal_loss(x2, t2))
    r2 = _reference(x2, t2)
    assert jnp.allclose(o2, r2, rtol=1e-5, atol=1e-6), (o2, r2)

    # Case 3: multi-block grid, 2-way core split with partial/dummy-block
    # masking, and size_average=False (sum reduction).
    x3 = jax.random.normal(k1, (2, 4, 32, 32), dtype=jnp.float32) * 2.0
    t3 = (jax.random.uniform(k2, (2, 4, 32, 32)) > 0.5).astype(jnp.float32)
    o3 = jax.block_until_ready(
        binary_focal_loss(x3, t3, size_average=False, tile_rows=24))
    r3 = _reference(x3, t3, size_average=False)
    assert jnp.allclose(o3, r3, rtol=1e-5, atol=1e-5), (o3, r3)

    print("KERNEL_OK")
</pallas_src>

<mosaic_0001>
module attributes {stable_mosaic.version = 11 : i64} {
  func.func @_focal_sum_kernel(%arg0: i32, %arg1: i32, %arg2: memref<16x128xf32, #tpu.memory_space<vmem>>, %arg3: memref<16x128xf32, #tpu.memory_space<vmem>>, %arg4: memref<8x128xf32, #tpu.memory_space<vmem>>) attributes {dimension_semantics = [#tpu.dimension_semantics<parallel>, #tpu.dimension_semantics<arbitrary>], iteration_bounds = array<i64: 1, 1>, scalar_prefetch = 0 : i64, scratch_operands = 0 : i64, tpu.core_type = #tpu.core_type<tc>, window_params = [{transform_indices = @transform_0, window_bounds = array<i64: 16, 128>}, {transform_indices = @transform_1, window_bounds = array<i64: 16, 128>}, {transform_indices = @transform_2, window_bounds = array<i64: 8, 128>}]} {
    %c0_i32 = arith.constant 0 : i32
    %0 = arith.cmpi eq, %arg1, %c0_i32 : i32
    %1 = arith.extui %0 : i1 to i32
    %c0_i32_0 = arith.constant 0 : i32
    %2 = arith.cmpi ne, %1, %c0_i32_0 : i32
    scf.if %2 {
      %cst_13 = arith.constant 0.000000e+00 : f32
      %29 = vector.broadcast %cst_13 : f32 to vector<8x128xf32>
      %c0_14 = arith.constant 0 : index
      %c0_15 = arith.constant 0 : index
      %30 = vector.load %arg4[%c0_14, %c0_15] : memref<8x128xf32, #tpu.memory_space<vmem>>, vector<8x128xf32>
      tpu.vector_store %arg4[%c0_14, %c0_15], %29 {strides = array<i32>} : memref<8x128xf32, #tpu.memory_space<vmem>>, vector<8x128xf32>,
    } else {
    }
    %c0 = arith.constant 0 : index
    %c0_1 = arith.constant 0 : index
    %3 = vector.load %arg2[%c0, %c0_1] : memref<16x128xf32, #tpu.memory_space<vmem>>, vector<16x128xf32>
    %c0_2 = arith.constant 0 : index
    %c0_3 = arith.constant 0 : index
    %4 = vector.load %arg3[%c0_2, %c0_3] : memref<16x128xf32, #tpu.memory_space<vmem>>, vector<16x128xf32>
    %cst = arith.constant 0.000000e+00 : f32
    %5 = vector.broadcast %cst : f32 to vector<16x128xf32>
    %6 = arith.maximumf %3, %5 : vector<16x128xf32>
    %7 = arith.mulf %3, %4 : vector<16x128xf32>
    %8 = arith.subf %6, %7 : vector<16x128xf32>
    %9 = math.absf %3 : vector<16x128xf32>
    %cst_4 = arith.constant 0.000000e+00 : f32
    %10 = vector.broadcast %cst_4 : f32 to vector<16x128xf32>
    %11 = arith.subf %10, %9 : vector<16x128xf32>
    %12 = math.exp %11 : vector<16x128xf32>
    %13 = math.log1p %12 : vector<16x128xf32>
    %14 = arith.addf %8, %13 : vector<16x128xf32>
    %cst_5 = arith.constant 0.000000e+00 : f32
    %15 = vector.broadcast %cst_5 : f32 to vector<16x128xf32>
    %16 = arith.subf %15, %14 : vector<16x128xf32>
    %17 = math.exp %16 : vector<16x128xf32>
    %cst_6 = arith.constant 1.000000e+00 : f32
    %18 = vector.broadcast %cst_6 : f32 to vector<16x128xf32>
    %19 = arith.subf %18, %17 : vector<16x128xf32>
    %20 = arith.mulf %19, %19 : vector<16x128xf32>
    %cst_7 = arith.constant 2.500000e-01 : f32
    %21 = vector.broadcast %cst_7 : f32 to vector<16x128xf32>
    %22 = arith.mulf %21, %20 : vector<16x128xf32>
    %23 = arith.mulf %22, %14 : vector<16x128xf32>
    %c0_8 = arith.constant 0 : index
    %c0_9 = arith.constant 0 : index
    %24 = vector.load %arg4[%c0_8, %c0_9] : memref<8x128xf32, #tpu.memory_space<vmem>>, vector<8x128xf32>
    %25 = vector.shape_cast %23 : vector<16x128xf32> to vector<2x8x128xf32>
    %cst_10 = arith.constant dense<0.000000e+00> : vector<8x128xf32>
    %26 = vector.multi_reduction <add>, %25, %cst_10 [0] : vector<2x8x128xf32> to vector<8x128xf32>
    %27 = arith.addf %24, %26 : vector<8x128xf32>
    %c0_11 = arith.constant 0 : index
    %c0_12 = arith.constant 0 : index
    %28 = vector.load %arg4[%c0_11, %c0_12] : memref<8x128xf32, #tpu.memory_space<vmem>>, vector<8x128xf32>
    tpu.vector_store %arg4[%c0_11, %c0_12], %27 {strides = array<i32>} : memref<8x128xf32, #tpu.memory_space<vmem>>, vector<8x128xf32>,
    return
  }
  func.func @transform_0(%arg0: i32, %arg1: i32) -> (i32, i32) {
    %c1_i32 = arith.constant 1 : i32
    %0 = arith.muli %arg0, %c1_i32 : i32
    %1 = arith.addi %0, %arg1 : i32
    %c0_i32 = arith.constant 0 : i32
    %2 = arith.minsi %1, %c0_i32 : i32
    %c0_i32_0 = arith.constant 0 : i32
    %c0_i32_1 = arith.constant 0 : i32
    return %2, %c0_i32_0 : i32, i32
  }
  func.func @transform_1(%arg0: i32, %arg1: i32) -> (i32, i32) {
    %c1_i32 = arith.constant 1 : i32
    %0 = arith.muli %arg0, %c1_i32 : i32
    %1 = arith.addi %0, %arg1 : i32
    %c0_i32 = arith.constant 0 : i32
    %2 = arith.minsi %1, %c0_i32 : i32
    %c0_i32_0 = arith.constant 0 : i32
    %c0_i32_1 = arith.constant 0 : i32
    return %2, %c0_i32_0 : i32, i32
  }
  func.func @transform_2(%arg0: i32, %arg1: i32) -> (i32, i32) {
    %c0_i32 = arith.constant 0 : i32
    %c0_i32_0 = arith.constant 0 : i32
    return %arg0, %c0_i32 : i32, i32
  }
}

</mosaic_0001>

<llo_original>
// kernel: tpu_custom_call.1
$region0: #{tpu_custom_call.1}
  #allocation0 [shape = 'u32[]', space=smem, size = 0x4, offset = 0x4, fixed_abs, tag = 'smem constant byte address 0x4 - core index']
  #allocation1 [shape = 'u32[144,128]{1,0:T(1,128)}', space=vmem, size = 0x12000, scoped, tag = 'internal scratch']
  %s0 = inlined_call_operand.hbm [shape: f32[16,128], index: 0, kind: input, shape index: {}]
  %s1 = inlined_call_operand.hbm [shape: f32[16,128], index: 1, kind: input, shape index: {}]
  %s2 = inlined_call_operand.hbm [shape: f32[8,128], index: 2, kind: output, shape index: {}]
  %s3 = sld [smem:[#allocation0]]
  $region30: #{tpu_custom_call.1} parent=0
    _
  %s5 = ssub.s32 1, %s3
  %s6 = scalar_select 0, %s5, %s3
  $region1: #{tpu_custom_call.1} parent=0
    #allocation2 [shape = 'u8[8192]{0}', space=vmem, size = 0x2000, scoped, tag = 'input window, operand 0, single buffered']
    #allocation3 [shape = 's32[1]{0}', space=sflag, size = 0x4, scoped, tag = 'scoped memory for tpu_custom_call.1']
    #allocation4 [shape = 's32[1]{0}', space=sflag, size = 0x4, scoped, tag = 'scoped memory for tpu_custom_call.1']
    #allocation5 [shape = 'u8[8192]{0}', space=vmem, size = 0x2000, scoped, tag = 'input window, operand 1, single buffered']
    #allocation6 [shape = 's32[1]{0}', space=sflag, size = 0x4, scoped, tag = 'scoped memory for tpu_custom_call.1']
    #allocation7 [shape = 'u8[4096]{0}', space=vmem, size = 0x1000, scoped, tag = 'output window, operand 0, single buffered']
    %7 = vsyncpa [#allocation3], 0
    %8 = vsyncpa [#allocation6], 0
    %9 = vsyncpa [#allocation4], 0
    // Predicated region
    $region2: #{tpu_custom_call.1} parent=1 // pred_check
      _
    $region3: #{tpu_custom_call.1} parent=1 // pred_check_branch
      %11 = sbr.rel (0) target = $region5
    $region4: #{tpu_custom_call.1} parent=1 // pred_region
      %s12 = sadd.s32 0, 0
      %p13 = scmp.lt.s32.totalorder %s12, 0
      %s14 = scalar_select %p13, %s12, 0
      %s15 = smul.u32 2, %s14
      %s17 = ssub.s32 256, 256
      %18 = vsyncadd [#allocation3], %s17
      %s19 = smul.addr %s15, 128
      %s20 = scalar_lea.hbm %s0, %s19
      %s21 = sshll.u32 [#allocation2], 4
      %s22 = int_to_ptr.vmem [resolvable:$true] %s21
      %27 = dma.hbm_to_vmem [thread:$0]  %s20, 256, %s22, [#allocation3], 128, 128, 8
    $region5: #{tpu_custom_call.1} parent=1 // pred_fallthru
      _
    // Predicated region
    $region6: #{tpu_custom_call.1} parent=1 // pred_check
      _
    $region7: #{tpu_custom_call.1} parent=1 // pred_check_branch
      %29 = sbr.rel (0) target = $region9
    $region8: #{tpu_custom_call.1} parent=1 // pred_region
      %s30 = sadd.s32 0, 0
      %p31 = scmp.lt.s32.totalorder %s30, 0
      %s32 = scalar_select %p31, %s30, 0
      %s33 = smul.u32 2, %s32
      %s35 = ssub.s32 256, 256
      %36 = vsyncadd [#allocation6], %s35
      %s37 = smul.addr %s33, 128
      %s38 = scalar_lea.hbm %s1, %s37
      %s39 = sshll.u32 [#allocation5], 4
      %s40 = int_to_ptr.vmem [resolvable:$true] %s39
      %45 = dma.hbm_to_vmem [thread:$0]  %s38, 256, %s40, [#allocation6], 128, 128, 8
    $region9: #{tpu_custom_call.1} parent=1 // pred_fallthru
      _
    // Predicated region
    $region10: #{tpu_custom_call.1} parent=1 // pred_check
      _
    $region11: #{tpu_custom_call.1} parent=1 // pred_check_branch
      %47 = sbr.rel (0) target = $region13
    $region12: #{tpu_custom_call.1} parent=1 // pred_region
      %48 = dma.done [#allocation3], 256
    $region13: #{tpu_custom_call.1} parent=1 // pred_fallthru
      _
    // Predicated region
    $region14: #{tpu_custom_call.1} parent=1 // pred_check
      _
    $region15: #{tpu_custom_call.1} parent=1 // pred_check_branch
      %50 = sbr.rel (0) target = $region17
    $region16: #{tpu_custom_call.1} parent=1 // pred_region
      %51 = dma.done [#allocation6], 256
    $region17: #{tpu_custom_call.1} parent=1 // pred_fallthru
      _
    %s52 = sadd.s32 0, 0
    %p53 = scmp.lt.s32.totalorder %s52, 0
    %s54 = scalar_select %p53, %s52, 0
    %s55 = smul.u32 2, %s54
    %s56 = sadd.s32 0, 0
    %p57 = scmp.lt.s32.totalorder %s56, 0
    %s58 = scalar_select %p57, %s56, 0
    %s59 = smul.u32 2, %s58
    %p60 = scmp.eq.s32.totalorder 0, 0
    // Predicated region
    $region18: #{tpu_custom_call.1} parent=1 // pred_check
      %p61 = pneg %p60
    $region19: #{tpu_custom_call.1} parent=1 // pred_check_branch
      %63 = sbr.rel (%p61) target = $region21
    $region20: #{tpu_custom_call.1} parent=1 // pred_region
      %64 = vst [vmem:[#allocation7] sm:$0xff] 0.0
    $region21: #{tpu_custom_call.1} parent=1 // pred_fallthru
      _
    %v65 = vld [vmem:[#allocation2] sm:$0xff]
    %v66 = vld [vmem:[#allocation2 + $0x8] sm:$0xff]
    %v67 = vld [vmem:[#allocation5] sm:$0xff]
    %v68 = vld [vmem:[#allocation5 + $0x8] sm:$0xff]
    %v69 = vmax.f32 %v65, 0.0
    %v70 = vmax.f32 %v66, 0.0
    %v71 = vmul.f32 %v65, %v67
    %v72 = vmul.f32 %v66, %v68
    %v73 = vsub.f32 %v69, %v71
    %v74 = vsub.f32 %v70, %v72
    %v75 = vand.u32 2147483647, %v65
    %v76 = vand.u32 2147483647, %v66
    %v77 = vsub.f32 0.0, %v75
    %v78 = vsub.f32 0.0, %v76
    %v79 = vmul.f32 %v77, 1.442695
    %v80 = vpow.pop %v79
    %v81 = vmul.f32 %v78, 1.442695
    %v82 = vpow.pop %v81
    %v83 = vadd.f32 %v80, 1.0
    %v84 = vlog2.pop %v83
    %v85 = vmul.f32 %v84, 0.6931472
    %v86 = vmul.f32 -0.5, %v80
    %v87 = vadd.f32 %v86, 1.0
    %v88 = vmul.f32 %v87, %v80
    %v89 = vand.u32 2147483647, %v80
    %vm90 = vcmp.lt.f32.partialorder %v89, 0.0004427343
    %v91 = vsel %vm90, %v88, %v85
    %v92 = vadd.f32 %v82, 1.0
    %v93 = vlog2.pop %v92
    %v94 = vmul.f32 %v93, 0.6931472
    %v95 = vmul.f32 -0.5, %v82
    %v96 = vadd.f32 %v95, 1.0
    %v97 = vmul.f32 %v96, %v82
    %v98 = vand.u32 2147483647, %v82
    %vm99 = vcmp.lt.f32.partialorder %v98, 0.0004427343
    %v100 = vsel %vm99, %v97, %v94
    %v101 = vadd.f32 %v73, %v91
    %v102 = vadd.f32 %v74, %v100
    %v103 = vsub.f32 0.0, %v101
    %v104 = vsub.f32 0.0, %v102
    %v105 = vmul.f32 %v103, 1.442695
    %v106 = vpow.pop %v105
    %v107 = vmul.f32 %v104, 1.442695
    %v108 = vpow.pop %v107
    %v109 = vsub.f32 1.0, %v106
    %v110 = vsub.f32 1.0, %v108
    %v111 = vmul.f32 %v109, %v109
    %v112 = vmul.f32 %v110, %v110
    %v113 = vmul.f32 %v111, 0.25
    %v114 = vmul.f32 %v112, 0.25
    %v115 = vmul.f32 %v113, %v101
    %v116 = vmul.f32 %v114, %v102
    %v117 = vld [vmem:[#allocation7] sm:$0xff]
    %v118 = vadd.f32 %v115, %v116
    %v119 = vadd.f32 %v117, %v118
    %120 = vst [vmem:[#allocation7] sm:$0xff] %v119
    // Predicated region
    $region22: #{tpu_custom_call.1} parent=1 // pred_check
      _
    $region23: #{tpu_custom_call.1} parent=1 // pred_check_branch
      %122 = sbr.rel (0) target = $region25
    $region24: #{tpu_custom_call.1} parent=1 // pred_region
      %s124 = ssub.s32 128, 128
      %125 = vsyncadd [#allocation4], %s124
      %s127 = sshll.u32 [#allocation7], 4
      %s128 = int_to_ptr.vmem [resolvable:$true] %s127
      %130 = dma.vmem_to_hbm [thread:$0]  %s128, 128, %s2, [#allocation4]
    $region25: #{tpu_custom_call.1} parent=1 // pred_fallthru
      _
    // Predicated region
    $region26: #{tpu_custom_call.1} parent=1 // pred_check
      _
    $region27: #{tpu_custom_call.1} parent=1 // pred_check_branch
      %132 = sbr.rel (0) target = $region29
    $region28: #{tpu_custom_call.1} parent=1 // pred_region
      %133 = dma.done [#allocation4], 128
    $region29: #{tpu_custom_call.1} parent=1 // pred_fallthru
      _
    %134 = vsyncpa [#allocation3], 1
    %135 = vsyncpa [#allocation6], 1
    %136 = vsyncpa [#allocation4], 1

</llo_original>
